<compile_context>
chip_gen: v6e
topology: v6e:2x2x1
jax: 0.10.0
libtpu: 0.0.40
codegen_flags: <defaults>
</compile_context>

<pallas_src>
import math

import jax
import jax.numpy as jnp
from jax.experimental import pallas as pl
from jax.experimental.pallas import tpu as pltpu


def _round_up(x: int, m: int) -> int:
    return ((x + m - 1) // m) * m


# ----------------------------- Pallas kernel ------------------------------

def _rotate_kernel(pc_ref, rot_ref, out_ref):
    """pc_ref / out_ref: (3, tn) f32 VMEM blocks, points lane-dense.
    rot_ref: (3, 3) f32 in SMEM (nine scalars).

    Computes out = pc @ R in the transposed layout:
        out_T[c, :] = R[0, c] * x + R[1, c] * y + R[2, c] * z
    -> 9 broadcasted multiply-adds on the VPU; trivially hidden under DMA.
    """
    x = pc_ref[0:1, :]
    y = pc_ref[1:2, :]
    z = pc_ref[2:3, :]
    for c in range(3):  # statically unrolled
        out_ref[c:c + 1, :] = (rot_ref[0, c] * x
                               + rot_ref[1, c] * y
                               + rot_ref[2, c] * z)


def rotate_points(point_cloud: jax.Array, rotation_matrix: jax.Array,
                  *, tn: int = 32768) -> jax.Array:
    """Apply `point_cloud @ rotation_matrix` with a Pallas TPU kernel.

    point_cloud: (N, 3) float32 -- any N (padded internally to the tile size).
    rotation_matrix: (3, 3) float32.
    """
    n, d = point_cloud.shape
    assert d == 3 and rotation_matrix.shape == (3, 3)

    # Lane-dense tiling: last block dim is a large multiple of 128.
    n128 = max(_round_up(n, 128), 128)
    tn_eff = min(tn, n128)
    if n128 >= 2 * 128:
        # Keep >= 2 grid steps when there is enough data so v7x's two
        # TensorCores can both stream (no-op on v5e/v6e).
        tn_eff = min(tn_eff, _round_up(-(-n128 // 2), 128))
    n_pad = _round_up(n128, tn_eff)
    grid = (n_pad // tn_eff,)

    # Layout plumbing done once in the wrapper: (N, 3) -> (3, N), zero-pad tail.
    pc_t = point_cloud.T
    if n_pad != n:
        pc_t = jnp.pad(pc_t, ((0, 0), (0, n_pad - n)))

    rot = rotation_matrix.astype(jnp.float32)

    # VMEM budget: each (3, tn) block pads to (8, tn) f32 = tn*32 B per buffer;
    # default tn=32768 -> 1 MiB/buffer, ~4 MiB with in+out double-buffering --
    # comfortably inside the scoped-VMEM default on v5e/v6e/v7x.
    out_t = pl.pallas_call(
        _rotate_kernel,
        out_shape=jax.ShapeDtypeStruct((3, n_pad), point_cloud.dtype),
        grid=grid,
        in_specs=[
            pl.BlockSpec((3, tn_eff), lambda i: (0, i)),
            # nine rotation scalars live in SMEM (no padded VMEM tile, no MXU)
            pl.BlockSpec(memory_space=pltpu.MemorySpace.SMEM),
        ],
        out_specs=pl.BlockSpec((3, tn_eff), lambda i: (0, i)),
        compiler_params=pltpu.CompilerParams(
            dimension_semantics=("parallel",),
        ),
        cost_estimate=pl.CostEstimate(
            flops=18 * n, transcendentals=0, bytes_accessed=24 * n),
    )(pc_t, rot)

    return out_t[:, :n].T


# -------------------------- rotation matrix glue ---------------------------

def _rotation_matrix_single_axis(axis: str, angle: jax.Array) -> jax.Array:
    c, s = jnp.cos(angle), jnp.sin(angle)
    zero = jnp.zeros_like(c)
    one = jnp.ones_like(c)
    if axis == "x":
        rows = [[one, zero, zero], [zero, c, -s], [zero, s, c]]
    elif axis == "y":
        rows = [[c, zero, s], [zero, one, zero], [-s, zero, c]]
    elif axis == "z":
        rows = [[c, -s, zero], [s, c, zero], [zero, zero, one]]
    else:
        raise ValueError("Axis must be one of 'x', 'y', or 'z'")
    return jnp.stack([jnp.stack(r) for r in rows]).astype(jnp.float32)


def constrained_rotation_matrix(key: jax.Array,
                                max_rotation_angle: float = 2 * math.pi,
                                allow_axes=(True, True, True)) -> jax.Array:
    """Same composition order as the PyTorch module: R = R_z @ R_y @ R_x
    (for allowed axes), uniform angles in [0, max_angle); applied as pc @ R."""
    r = jnp.eye(3, dtype=jnp.float32)
    axes = ["x", "y", "z"]
    keys = jax.random.split(key, 3)
    for i, axis in enumerate(axes):
        if allow_axes[i]:
            angle = jax.random.uniform(keys[i], ()) * max_rotation_angle
            r_axis = _rotation_matrix_single_axis(axis, angle)
            r = r_axis @ r
    return r


class RandomRotation:
    """JAX/Pallas port of the PyTorch RandomRotation module."""

    def __init__(self, max_rotation_angle=2 * math.pi,
                 allow_axes=(True, True, True)):
        self.max_rotation_angle = max_rotation_angle
        self.allow_axes = allow_axes

    def __call__(self, point_cloud: jax.Array, key: jax.Array) -> jax.Array:
        # TODO(synk): PyTorch draws angles from global torch RNG per forward
        # call; here randomness comes from an explicit JAX key.
        rot = constrained_rotation_matrix(
            key, self.max_rotation_angle, self.allow_axes)
        return rotate_points(point_cloud, rot)


# --------------------------------- main ------------------------------------

if __name__ == "__main__":
    key = jax.random.PRNGKey(0)
    k_pc, k_rot = jax.random.split(key)

    # Small deterministic point cloud with a ragged N (exercises the padded
    # tail and a 2-step parallel grid).
    N = 200
    point_cloud = jax.random.normal(k_pc, (N, 3), dtype=jnp.float32)

    module = RandomRotation(max_rotation_angle=2 * math.pi,
                            allow_axes=(True, True, True))
    out = module(point_cloud, k_rot)
    out = jax.block_until_ready(out)

    # Correctness check vs. plain-JAX reference (same key, same composition).
    rot_ref = constrained_rotation_matrix(k_rot)
    ref = point_cloud @ rot_ref
    assert out.shape == (N, 3)
    assert jnp.allclose(out, ref, atol=1e-5, rtol=1e-5)

    print("KERNEL_OK")
</pallas_src>

<mosaic_0001>
module attributes {stable_mosaic.version = 11 : i64} {
  func.func @_rotate_kernel(%arg0: i32, %arg1: memref<3x128xf32, #tpu.memory_space<vmem>>, %arg2: memref<3x3xf32, #tpu.memory_space<smem>>, %arg3: memref<3x128xf32, #tpu.memory_space<vmem>>) attributes {dimension_semantics = [#tpu.dimension_semantics<parallel>], iteration_bounds = array<i64: 2>, scalar_prefetch = 0 : i64, scratch_operands = 0 : i64, tpu.core_type = #tpu.core_type<tc>, window_params = [{transform_indices = @transform_0, window_bounds = array<i64: 3, 128>}, {transform_indices = @transform_1, window_bounds = array<i64: 3, 3>}, {transform_indices = @transform_2, window_bounds = array<i64: 3, 128>}]} {
    %c0 = arith.constant 0 : index
    %c0_0 = arith.constant 0 : index
    %0 = vector.load %arg1[%c0, %c0_0] : memref<3x128xf32, #tpu.memory_space<vmem>>, vector<1x128xf32>
    %c1 = arith.constant 1 : index
    %c0_1 = arith.constant 0 : index
    %1 = vector.load %arg1[%c1, %c0_1] : memref<3x128xf32, #tpu.memory_space<vmem>>, vector<1x128xf32>
    %c2 = arith.constant 2 : index
    %c0_2 = arith.constant 0 : index
    %2 = vector.load %arg1[%c2, %c0_2] : memref<3x128xf32, #tpu.memory_space<vmem>>, vector<1x128xf32>
    %c0_3 = arith.constant 0 : index
    %c0_4 = arith.constant 0 : index
    %3 = memref.load %arg2[%c0_3, %c0_4] : memref<3x3xf32, #tpu.memory_space<smem>>
    %4 = vector.broadcast %3 : f32 to vector<1x128xf32>
    %5 = arith.mulf %4, %0 : vector<1x128xf32>
    %c1_5 = arith.constant 1 : index
    %c0_6 = arith.constant 0 : index
    %6 = memref.load %arg2[%c1_5, %c0_6] : memref<3x3xf32, #tpu.memory_space<smem>>
    %7 = vector.broadcast %6 : f32 to vector<1x128xf32>
    %8 = arith.mulf %7, %1 : vector<1x128xf32>
    %9 = arith.addf %5, %8 : vector<1x128xf32>
    %c2_7 = arith.constant 2 : index
    %c0_8 = arith.constant 0 : index
    %10 = memref.load %arg2[%c2_7, %c0_8] : memref<3x3xf32, #tpu.memory_space<smem>>
    %11 = vector.broadcast %10 : f32 to vector<1x128xf32>
    %12 = arith.mulf %11, %2 : vector<1x128xf32>
    %13 = arith.addf %9, %12 : vector<1x128xf32>
    %c0_9 = arith.constant 0 : index
    %c0_10 = arith.constant 0 : index
    %14 = vector.load %arg3[%c0_9, %c0_10] : memref<3x128xf32, #tpu.memory_space<vmem>>, vector<1x128xf32>
    tpu.vector_store %arg3[%c0_9, %c0_10], %13 {strides = array<i32>} : memref<3x128xf32, #tpu.memory_space<vmem>>, vector<1x128xf32>,
    %c0_11 = arith.constant 0 : index
    %c1_12 = arith.constant 1 : index
    %15 = memref.load %arg2[%c0_11, %c1_12] : memref<3x3xf32, #tpu.memory_space<smem>>
    %16 = vector.broadcast %15 : f32 to vector<1x128xf32>
    %17 = arith.mulf %16, %0 : vector<1x128xf32>
    %c1_13 = arith.constant 1 : index
    %c1_14 = arith.constant 1 : index
    %18 = memref.load %arg2[%c1_13, %c1_14] : memref<3x3xf32, #tpu.memory_space<smem>>
    %19 = vector.broadcast %18 : f32 to vector<1x128xf32>
    %20 = arith.mulf %19, %1 : vector<1x128xf32>
    %21 = arith.addf %17, %20 : vector<1x128xf32>
    %c2_15 = arith.constant 2 : index
    %c1_16 = arith.constant 1 : index
    %22 = memref.load %arg2[%c2_15, %c1_16] : memref<3x3xf32, #tpu.memory_space<smem>>
    %23 = vector.broadcast %22 : f32 to vector<1x128xf32>
    %24 = arith.mulf %23, %2 : vector<1x128xf32>
    %25 = arith.addf %21, %24 : vector<1x128xf32>
    %c1_17 = arith.constant 1 : index
    %c0_18 = arith.constant 0 : index
    %26 = vector.load %arg3[%c1_17, %c0_18] : memref<3x128xf32, #tpu.memory_space<vmem>>, vector<1x128xf32>
    tpu.vector_store %arg3[%c1_17, %c0_18], %25 {strides = array<i32>} : memref<3x128xf32, #tpu.memory_space<vmem>>, vector<1x128xf32>,
    %c0_19 = arith.constant 0 : index
    %c2_20 = arith.constant 2 : index
    %27 = memref.load %arg2[%c0_19, %c2_20] : memref<3x3xf32, #tpu.memory_space<smem>>
    %28 = vector.broadcast %27 : f32 to vector<1x128xf32>
    %29 = arith.mulf %28, %0 : vector<1x128xf32>
    %c1_21 = arith.constant 1 : index
    %c2_22 = arith.constant 2 : index
    %30 = memref.load %arg2[%c1_21, %c2_22] : memref<3x3xf32, #tpu.memory_space<smem>>
    %31 = vector.broadcast %30 : f32 to vector<1x128xf32>
    %32 = arith.mulf %31, %1 : vector<1x128xf32>
    %33 = arith.addf %29, %32 : vector<1x128xf32>
    %c2_23 = arith.constant 2 : index
    %c2_24 = arith.constant 2 : index
    %34 = memref.load %arg2[%c2_23, %c2_24] : memref<3x3xf32, #tpu.memory_space<smem>>
    %35 = vector.broadcast %34 : f32 to vector<1x128xf32>
    %36 = arith.mulf %35, %2 : vector<1x128xf32>
    %37 = arith.addf %33, %36 : vector<1x128xf32>
    %c2_25 = arith.constant 2 : index
    %c0_26 = arith.constant 0 : index
    %38 = vector.load %arg3[%c2_25, %c0_26] : memref<3x128xf32, #tpu.memory_space<vmem>>, vector<1x128xf32>
    tpu.vector_store %arg3[%c2_25, %c0_26], %37 {strides = array<i32>} : memref<3x128xf32, #tpu.memory_space<vmem>>, vector<1x128xf32>,
    return
  }
  func.func @transform_0(%arg0: i32) -> (i32, i32) {
    %c0_i32 = arith.constant 0 : i32
    %c0_i32_0 = arith.constant 0 : i32
    return %c0_i32, %arg0 : i32, i32
  }
  func.func @transform_1(%arg0: i32) -> (i32, i32) {
    %c0_i32 = arith.constant 0 : i32
    %c0_i32_0 = arith.constant 0 : i32
    %c0_i32_1 = arith.constant 0 : i32
    return %c0_i32, %c0_i32_0 : i32, i32
  }
  func.func @transform_2(%arg0: i32) -> (i32, i32) {
    %c0_i32 = arith.constant 0 : i32
    %c0_i32_0 = arith.constant 0 : i32
    return %c0_i32, %arg0 : i32, i32
  }
}

</mosaic_0001>

<llo_original>
// kernel: tpu_custom_call.1
$region0: #{tpu_custom_call.1}
  #allocation0 [shape = 'u32[]', space=smem, size = 0x4, offset = 0x4, fixed_abs, tag = 'smem constant byte address 0x4 - core index']
  #allocation1 [shape = 'u32[144,128]{1,0:T(1,128)}', space=vmem, size = 0x12000, scoped, tag = 'internal scratch']
  %s0 = inlined_call_operand.hbm [shape: f32[3,256], index: 0, kind: input, shape index: {}]
  %s1 = inlined_call_operand.hbm [shape: f32[3,3], index: 1, kind: input, shape index: {}]
  %s2 = inlined_call_operand.hbm [shape: f32[3,256], index: 2, kind: output, shape index: {}]
  %s3 = sld [smem:[#allocation0]]
  $region49: #{tpu_custom_call.1} parent=0
    _
  %s5 = ssub.s32 1, %s3
  %s6 = scalar_select 0, %s5, %s3
  $region1: #{tpu_custom_call.1} parent=0
    #allocation2 [shape = 'u8[4096]{0}', space=vmem, size = 0x1000, scoped, tag = 'input window, operand 0']
    #allocation3 [shape = 's32[2]{0}', space=sflag, size = 0x8, scoped, tag = 'scoped memory for tpu_custom_call.1']
    #allocation4 [shape = 's32[2]{0}', space=sflag, size = 0x8, scoped, tag = 'scoped memory for tpu_custom_call.1']
    #allocation5 [shape = 's32[2]{0}', space=sflag, size = 0x8, scoped, tag = 'scoped memory for tpu_custom_call.1']
    #allocation6 [shape = 'u8[2048]{0}', space=smem, size = 0x800, scoped, tag = 'input window, operand 1, single buffered']
    #allocation7 [shape = 'u8[4096]{0}', space=vmem, size = 0x1000, scoped, tag = 'output window, operand 0']
    %7 = vsyncpa [#allocation3], 0
    %s8 = scalar_lea.sflag [#allocation3], 1
    %9 = vsyncpa %s8, 0
    %10 = vsyncpa [#allocation5], 0
    %11 = vsyncpa [#allocation4], 0
    %s12 = scalar_lea.sflag [#allocation4], 1
    %13 = vsyncpa %s12, 0
    loop: start=0, step=1, limit=4
    $region2: #{tpu_custom_call.1} parent=1 // loop_pre_header
      _
    $region3: #{tpu_custom_call.1} parent=1 // loop_header
      %s15 = sphi 0, %s19
      %p16 = scmp.ge.s32.totalorder %s15, 4
      %s25 = sphi 0, %s27
      %s28 = sphi 0, %s25
      %s29 = sphi 0, %s28
      %s45 = sphi 0, %s29
      %s49 = sphi 0, %s49
      %s51 = sphi 0, %s49
      %s52 = sphi 0, %s51
      %s66 = sphi 0, %s52
      %s72 = sphi 0, %s74
      %s75 = sphi 0, %s72
      %s76 = sphi 0, %s75
      %s92 = sphi 0, %s76
    $region4: #{tpu_custom_call.1} parent=1 // loop_header_branch
      %18 = sbr.rel (%p16) target = $region8
    $region5: #{tpu_custom_call.1} parent=1 // loop_body
      %s20 = ssub.s32 %s15, 1
      %s21 = ssub.s32 %s15, 2
      %s22 = sadd.s32 %s15, 1
      %s23 = ssub.s32 %s15, %s22
      %p24 = scmp.eq.s32.totalorder %s23, 0
      %s26 = sadd.s32 %s25, 1
      %s27 = scalar_select %p24, %s25, %s26
      %p30 = pneg %p24
      %p31 = scmp.eq.s32.totalorder %s15, 1
      %p32 = por %p30, %p31
      %p33 = scmp.ne.s32.totalorder %s25, %s28
      %p34 = scmp.eq.s32.totalorder %s15, 0
      %p35 = por %p33, %p34
      %p36 = scmp.ne.s32.totalorder %s25, %s28
      %p37 = scmp.eq.s32.totalorder %s20, 1
      %p38 = por %p36, %p37
      %p39 = scmp.ne.s32.totalorder %s28, %s29
      %p40 = scmp.eq.s32.totalorder %s20, 0
      %p41 = por %p39, %p40
      %p42 = scmp.ne.s32.totalorder %s28, %s29
      %p43 = scmp.eq.s32.totalorder %s21, 1
      %p44 = por %p42, %p43
      %p46 = scmp.ne.s32.totalorder %s29, %s45
      %p47 = scmp.eq.s32.totalorder %s21, 0
      %p48 = por %p46, %p47
      %s50 = sadd.s32 %s49, 1
      %p53 = scmp.eq.s32.totalorder %s15, 1
      %p54 = scmp.ne.s32.totalorder %s49, %s51
      %p55 = scmp.eq.s32.totalorder %s15, 0
      %p56 = por %p54, %p55
      %p57 = scmp.ne.s32.totalorder %s49, %s51
      %p58 = scmp.eq.s32.totalorder %s20, 1
      %p59 = por %p57, %p58
      %p60 = scmp.ne.s32.totalorder %s51, %s52
      %p61 = scmp.eq.s32.totalorder %s20, 0
      %p62 = por %p60, %p61
      %p63 = scmp.ne.s32.totalorder %s51, %s52
      %p64 = scmp.eq.s32.totalorder %s21, 1
      %p65 = por %p63, %p64
      %p67 = scmp.ne.s32.totalorder %s52, %s66
      %p68 = scmp.eq.s32.totalorder %s21, 0
      %p69 = por %p67, %p68
      %s70 = ssub.s32 %s15, %s22
      %p71 = scmp.eq.s32.totalorder %s70, 0
      %s73 = sadd.s32 %s72, 1
      %s74 = scalar_select %p71, %s72, %s73
      %p77 = pneg %p71
      %p78 = scmp.eq.s32.totalorder %s15, 1
      %p79 = por %p77, %p78
      %p80 = scmp.ne.s32.totalorder %s72, %s75
      %p81 = scmp.eq.s32.totalorder %s15, 0
      %p82 = por %p80, %p81
      %p83 = scmp.ne.s32.totalorder %s72, %s75
      %p84 = scmp.eq.s32.totalorder %s20, 1
      %p85 = por %p83, %p84
      %p86 = scmp.ne.s32.totalorder %s75, %s76
      %p87 = scmp.eq.s32.totalorder %s20, 0
      %p88 = por %p86, %p87
      %p89 = scmp.ne.s32.totalorder %s75, %s76
      %p90 = scmp.eq.s32.totalorder %s21, 1
      %p91 = por %p89, %p90
      %p93 = scmp.ne.s32.totalorder %s76, %s92
      %p94 = scmp.eq.s32.totalorder %s21, 0
      %p95 = por %p93, %p94
      %p96 = scmp.le.s32.totalorder 1, %s15
      %p97 = scmp.lt.s32.totalorder %s15, 3
      %p98 = pnand %p96, %p97
      %p99 = pneg %p98
      // Predicated region
      $region9: #{tpu_custom_call.1} parent=5 // pred_check
        _
      $region10: #{tpu_custom_call.1} parent=5 // pred_check_branch
        %101 = sbr.rel (%p98) target = $region12
      $region11: #{tpu_custom_call.1} parent=5 // pred_region
        %s102 = ssub.s32 %s15, 1
        // Predicated region
        $region13: #{tpu_custom_call.1} parent=11 // pred_check
          %p103 = pneg %p62
        $region14: #{tpu_custom_call.1} parent=11 // pred_check_branch
          %105 = sbr.rel (%p103) target = $region16
        $region15: #{tpu_custom_call.1} parent=11 // pred_region
          %s107 = ssub.s32 64, 64
          %108 = vsyncadd [#allocation5], %s107
          %111 = dma.hbm_to_smem %s1, 64, [#allocation6], [#allocation5]
        $region16: #{tpu_custom_call.1} parent=11 // pred_fallthru
          _
      $region12: #{tpu_custom_call.1} parent=5 // pred_fallthru
        _
      %p112 = scmp.lt.s32.totalorder %s15, 2
      // Predicated region
      $region17: #{tpu_custom_call.1} parent=5 // pred_check
        %p113 = pneg %p112
      $region18: #{tpu_custom_call.1} parent=5 // pred_check_branch
        %115 = sbr.rel (%p113) target = $region20
      $region19: #{tpu_custom_call.1} parent=5 // pred_region
        // Predicated region
        $region21: #{tpu_custom_call.1} parent=19 // pred_check
          %p116 = pneg %p35
        $region22: #{tpu_custom_call.1} parent=19 // pred_check_branch
          %118 = sbr.rel (%p116) target = $region24
        $region23: #{tpu_custom_call.1} parent=19 // pred_region
          %s119 = sand.u32 %s25, 1
          %s120 = scalar_lea.sflag [#allocation3], %s119
          %s121 = sand.u32 %s25, 1
          %s122 = smul.addr %s121, 4
          %s123 = scalar_lea.vmem [#allocation2], %s122
          %s125 = ssub.s32 64, 64
          %126 = vsyncadd %s120, %s125
          %s127 = smul.addr %s15, 64
          %s128 = scalar_lea.hbm %s0, %s127
          %s130 = sshll.u32 %s123, 4
          %s131 = int_to_ptr.vmem [resolvable:$true] %s130
          %133 = dma.hbm_to_vmem [thread:$0]  %s128, 64, %s131, %s120
        $region24: #{tpu_custom_call.1} parent=19 // pred_fallthru
          _
      $region20: #{tpu_custom_call.1} parent=5 // pred_fallthru
        _
      %p134 = scmp.le.s32.totalorder 1, %s15
      %p135 = scmp.lt.s32.totalorder %s15, 3
      %p136 = pnand %p134, %p135
      %p137 = pneg %p136
      // Predicated region
      $region25: #{tpu_custom_call.1} parent=5 // pred_check
        _
      $region26: #{tpu_custom_call.1} parent=5 // pred_check_branch
        %139 = sbr.rel (%p136) target = $region28
      $region27: #{tpu_custom_call.1} parent=5 // pred_region
        %s140 = ssub.s32 %s15, 1
        %s141 = sand.u32 %s28, 1
        %s142 = scalar_lea.sflag [#allocation3], %s141
        %s143 = sand.u32 %s28, 1
        %s144 = smul.addr %s143, 4
        %s145 = scalar_lea.vmem [#allocation2], %s144
        // Predicated region
        $region29: #{tpu_custom_call.1} parent=27 // pred_check
          %p146 = pneg %p41
        $region30: #{tpu_custom_call.1} parent=27 // pred_check_branch
          %148 = sbr.rel (%p146) target = $region32
        $region31: #{tpu_custom_call.1} parent=27 // pred_region
          %149 = dma.done %s142, 64
        $region32: #{tpu_custom_call.1} parent=27 // pred_fallthru
          _
        // Predicated region
        $region33: #{tpu_custom_call.1} parent=27 // pred_check
          %p150 = pneg %p62
        $region34: #{tpu_custom_call.1} parent=27 // pred_check_branch
          %152 = sbr.rel (%p150) target = $region36
        $region35: #{tpu_custom_call.1} parent=27 // pred_region
          %153 = dma.done [#allocation5], 64
        $region36: #{tpu_custom_call.1} parent=27 // pred_fallthru
          _
        %154 = sfence
        %s155 = sand.u32 %s28, 1
        %s156 = scalar_lea.sflag [#allocation3], %s155
        %s157 = sand.u32 %s28, 1
        %s158 = smul.addr %s157, 4
        %s159 = scalar_lea.vmem [#allocation2], %s158
        %p160 = pneg %p41
        %p161 = pneg %p38
        %p162 = pneg %p62
        %p163 = pneg %p59
        %p164 = pneg %p88
        %p165 = pneg %p85
        %s166 = sand.u32 %s75, 1
        %s167 = scalar_lea.sflag [#allocation4], %s166
        %s168 = sand.u32 %s75, 1
        %s169 = smul.addr %s168, 4
        %s170 = scalar_lea.vmem [#allocation7], %s169
        %v171 = vld [vmem:[%s145] sm:$0x1]
        %v172 = vld [vmem:[%s145 + $0x1] sm:$0x1]
        %v173 = vld [vmem:[%s145 + $0x2] sm:$0x1]
        %s174 = sld [smem:[#allocation6]]
        %v175 = vstv %s174
        %v176 = vmul.f32 %v175, %v171
        %s177 = sld [smem:[#allocation6 + $0x80]]
        %v178 = vstv %s177
        %v179 = vmul.f32 %v178, %v172
        %v180 = vadd.f32 %v176, %v179
        %s181 = sld [smem:[#allocation6 + $0x100]]
        %v182 = vstv %s181
        %v183 = vmul.f32 %v182, %v173
        %v184 = vadd.f32 %v180, %v183
        %185 = vst [vmem:[%s170] sm:$0x1] %v184
        %s186 = sld [smem:[#allocation6 + $0x1]]
        %v187 = vstv %s186
        %v188 = vmul.f32 %v187, %v171
        %s189 = sld [smem:[#allocation6 + $0x81]]
        %v190 = vstv %s189
        %v191 = vmul.f32 %v190, %v172
        %v192 = vadd.f32 %v188, %v191
        %s193 = sld [smem:[#allocation6 + $0x101]]
        %v194 = vstv %s193
        %v195 = vmul.f32 %v194, %v173
        %v196 = vadd.f32 %v192, %v195
        %197 = vst [vmem:[%s170 + $0x1] sm:$0x1] %v196
        %s198 = sld [smem:[#allocation6 + $0x2]]
        %v199 = vstv %s198
        %v200 = vmul.f32 %v199, %v171
        %s201 = sld [smem:[#allocation6 + $0x82]]
        %v202 = vstv %s201
        %v203 = vmul.f32 %v202, %v172
        %v204 = vadd.f32 %v200, %v203
        %s205 = sld [smem:[#allocation6 + $0x102]]
        %v206 = vstv %s205
        %v207 = vmul.f32 %v206, %v173
        %v208 = vadd.f32 %v204, %v207
        %209 = vst [vmem:[%s170 + $0x2] sm:$0x1] %v208
        %s210 = sand.u32 %s75, 1
        %s211 = scalar_lea.sflag [#allocation4], %s210
        %s212 = sand.u32 %s75, 1
        %s213 = smul.addr %s212, 4
        %s214 = scalar_lea.vmem [#allocation7], %s213
        // Predicated region
        $region37: #{tpu_custom_call.1} parent=27 // pred_check
          %p215 = pneg %p85
        $region38: #{tpu_custom_call.1} parent=27 // pred_check_branch
          %217 = sbr.rel (%p215) target = $region40
        $region39: #{tpu_custom_call.1} parent=27 // pred_region
          %s219 = ssub.s32 64, 64
          %220 = vsyncadd %s211, %s219
          %s221 = smul.addr %s20, 64
          %s222 = scalar_lea.hbm %s2, %s221
          %s224 = sshll.u32 %s214, 4
          %s225 = int_to_ptr.vmem [resolvable:$true] %s224
          %227 = dma.vmem_to_hbm [thread:$0]  %s225, 64, %s222, %s211
        $region40: #{tpu_custom_call.1} parent=27 // pred_fallthru
          _
      $region28: #{tpu_custom_call.1} parent=5 // pred_fallthru
        _
      %p228 = scmp.le.s32.totalorder 2, %s15
      // Predicated region
      $region41: #{tpu_custom_call.1} parent=5 // pred_check
        %p229 = pneg %p228
      $region42: #{tpu_custom_call.1} parent=5 // pred_check_branch
        %231 = sbr.rel (%p229) target = $region44
      $region43: #{tpu_custom_call.1} parent=5 // pred_region
        %s232 = ssub.s32 %s15, 2
        // Predicated region
        $region45: #{tpu_custom_call.1} parent=43 // pred_check
          %p233 = pneg %p91
        $region46: #{tpu_custom_call.1} parent=43 // pred_check_branch
          %235 = sbr.rel (%p233) target = $region48
        $region47: #{tpu_custom_call.1} parent=43 // pred_region
          %s236 = sand.u32 %s76, 1
          %s237 = scalar_lea.sflag [#allocation4], %s236
          %s238 = sand.u32 %s76, 1
          %s239 = smul.addr %s238, 4
          %s240 = scalar_lea.vmem [#allocation7], %s239
          %241 = dma.done %s237, 64
        $region48: #{tpu_custom_call.1} parent=43 // pred_fallthru
          _
      $region44: #{tpu_custom_call.1} parent=5 // pred_fallthru
        _
    $region6: #{tpu_custom_call.1} parent=1 // loop_footer
      %s19 = sadd.s32 1, %s15
    $region7: #{tpu_custom_call.1} parent=1 // loop_footer_branch
      %14 = sbr.rel target = $region3
    $region8: #{tpu_custom_call.1} parent=1 // loop_exit
      _
    %242 = vsyncpa [#allocation3], 1
    %s243 = scalar_lea.sflag [#allocation3], 1
    %244 = vsyncpa %s243, 1
    %245 = vsyncpa [#allocation4], 1
    %s246 = scalar_lea.sflag [#allocation4], 1
    %247 = vsyncpa %s246, 1
    %248 = vsyncpa [#allocation5], 1
    %s249 = scalar_lea.sflag [#allocation5], 1
    %250 = vsyncpa %s249, 1

</llo_original>
